<compile_context>
chip_gen: v6e
topology: v6e:2x2x1
jax: 0.10.0
libtpu: 0.0.40
codegen_flags: <defaults>
</compile_context>

<pallas_src>
import jax
import jax.numpy as jnp
from jax.experimental import pallas as pl
from jax.experimental.pallas import tpu as pltpu


def _make_kernel(num_inputs, eps):
    def kernel(*refs):
        # refs: x_0..x_{I-1}, gamma, beta, o_0..o_{I-1}
        x_refs = refs[:num_inputs]
        gamma_ref = refs[num_inputs]
        beta_ref = refs[num_inputs + 1]
        o_refs = refs[num_inputs + 2:]

        gamma = gamma_ref[...]  # (I, F) f32, VMEM-resident across grid steps
        beta = beta_ref[...]    # (I, F) f32

        for i in range(num_inputs):  # static unroll over the I parallel norms
            x = x_refs[i][...].astype(jnp.float32)          # (tb, F) lane-dense
            nf = x.shape[-1]
            mean = jnp.mean(x, axis=-1, keepdims=True)      # (tb, 1)
            centered = x - mean
            # torch.std default is the UNBIASED estimator (divide by N-1).
            # NOTE: num_features == 1 divides by zero (NaN), same as torch.
            var = jnp.sum(centered * centered, axis=-1, keepdims=True) / jnp.float32(nf - 1)
            # eps is added to std (NOT variance) to match the torch reference.
            denom = jnp.sqrt(var) + jnp.float32(eps)        # (tb, 1)
            inv = pl.reciprocal(denom, approx=False)        # per-row, exact
            g = gamma[i:i + 1, :]                           # (1, F)
            b = beta[i:i + 1, :]                            # (1, F)
            y = centered * inv * g + b
            o_refs[i][...] = y.astype(o_refs[i].dtype)

    return kernel


def _choose_tb(batch, num_inputs, num_features, itemsize,
               block_budget_bytes=24 * 1024 * 1024):
    """Largest batch tile whose double-buffered in+out blocks fit the budget."""
    # Per batch row per grid step: I input rows + I output rows, x2 buffers.
    per_row = 2 * 2 * num_inputs * num_features * itemsize
    cap = max(1, block_budget_bytes // per_row)
    sub = 16 if itemsize <= 2 else 8  # bf16 packs 16 sublanes per vreg
    if cap >= sub:
        cap = (cap // sub) * sub
    tb = min(batch, cap)
    if batch >= sub:
        tb = max(sub, (tb // sub) * sub)
    # v7x has 2 TensorCores: keep >= 2 grid steps when batch is big enough.
    if batch >= 2 * sub and pl.cdiv(batch, tb) < 2:
        tb = max(sub, ((batch // 2) // sub) * sub)
    return max(1, min(tb, batch))


def parallel_layer_norm(inputs, gamma, beta, *, eps=1e-6, tb=None):
    """inputs: list/tuple of num_inputs arrays, each (batch, num_features).
    gamma, beta: (num_inputs, num_features).
    Returns a tuple of num_inputs arrays, each (batch, num_features)."""
    inputs = tuple(inputs)
    num_inputs = len(inputs)
    B, F = inputs[0].shape
    for x in inputs:
        assert x.shape == (B, F), "all inputs must share (batch, num_features)"
    assert gamma.shape == (num_inputs, F)
    assert beta.shape == (num_inputs, F)

    # Pre-cast params once in the wrapper (kernel keeps them f32, VMEM-resident).
    gamma32 = gamma.astype(jnp.float32)
    beta32 = beta.astype(jnp.float32)

    itemsize = jnp.dtype(inputs[0].dtype).itemsize
    if tb is None:
        tb = _choose_tb(B, num_inputs, F, itemsize)
    tb = max(1, min(tb, B))
    grid = (pl.cdiv(B, tb),)  # ragged tail handled by Pallas (row-wise op)

    kernel = _make_kernel(num_inputs, eps)

    def row_spec():
        return pl.BlockSpec((tb, F), lambda b: (b, 0))

    param_spec_g = pl.BlockSpec((num_inputs, F), lambda b: (0, 0))
    param_spec_b = pl.BlockSpec((num_inputs, F), lambda b: (0, 0))

    out = pl.pallas_call(
        kernel,
        out_shape=tuple(jax.ShapeDtypeStruct((B, F), x.dtype) for x in inputs),
        grid_spec=pltpu.PrefetchScalarGridSpec(
            num_scalar_prefetch=0,
            grid=grid,
            in_specs=[row_spec() for _ in range(num_inputs)]
                     + [param_spec_g, param_spec_b],
            out_specs=[row_spec() for _ in range(num_inputs)],
        ),
        compiler_params=pltpu.CompilerParams(
            dimension_semantics=("parallel",),
            # Above the 16/32 MiB default scoped limits, below v7x's 64 MiB physical.
            vmem_limit_bytes=48 * 1024 * 1024,
        ),
    )(*inputs, gamma32, beta32)

    return tuple(out)


def _reference(inputs, gamma, beta, eps=1e-6):
    x = jnp.stack(inputs, axis=-2).astype(jnp.float32)
    mean = jnp.mean(x, axis=-1, keepdims=True)
    var = jnp.sum((x - mean) ** 2, axis=-1, keepdims=True) / (x.shape[-1] - 1)
    std = jnp.sqrt(var)
    y = gamma * (x - mean) / (std + eps) + beta
    return tuple(y[:, i, :] for i in range(x.shape[-2]))


if __name__ == "__main__":
    batch = 8
    num_inputs = 3
    num_features = 32
    eps = 1e-6

    key = jax.random.PRNGKey(0)
    k_in, k_g, k_b = jax.random.split(key, 3)

    # num_inputs separate input tensors, each (batch, num_features)
    xs = jax.random.normal(k_in, (num_inputs, batch, num_features), jnp.float32)
    inputs = [xs[i] for i in range(num_inputs)]

    # Deterministic parameter init (shapes match nn.Parameter(num_inputs, num_features)).
    gamma = jax.random.normal(k_g, (num_inputs, num_features), jnp.float32) * 0.1 + 1.0
    beta = jax.random.normal(k_b, (num_inputs, num_features), jnp.float32) * 0.1

    outs = parallel_layer_norm(inputs, gamma, beta, eps=eps)
    outs = jax.block_until_ready(outs)

    refs = _reference(inputs, gamma, beta, eps=eps)
    for o, r in zip(outs, refs):
        assert o.shape == (batch, num_features)
        assert jnp.allclose(o, r, atol=1e-5, rtol=1e-5)

    print("KERNEL_OK")
</pallas_src>

<mosaic_0001>
module attributes {stable_mosaic.version = 11 : i64} {
  func.func @kernel(%arg0: i32, %arg1: memref<8x32xf32, #tpu.memory_space<vmem>>, %arg2: memref<8x32xf32, #tpu.memory_space<vmem>>, %arg3: memref<8x32xf32, #tpu.memory_space<vmem>>, %arg4: memref<3x32xf32, #tpu.memory_space<vmem>>, %arg5: memref<3x32xf32, #tpu.memory_space<vmem>>, %arg6: memref<8x32xf32, #tpu.memory_space<vmem>>, %arg7: memref<8x32xf32, #tpu.memory_space<vmem>>, %arg8: memref<8x32xf32, #tpu.memory_space<vmem>>) attributes {dimension_semantics = [#tpu.dimension_semantics<parallel>], iteration_bounds = array<i64: 1>, scalar_prefetch = 0 : i64, scratch_operands = 0 : i64, tpu.core_type = #tpu.core_type<tc>, window_params = [{transform_indices = @transform_0, window_bounds = array<i64: 8, 32>}, {transform_indices = @transform_1, window_bounds = array<i64: 8, 32>}, {transform_indices = @transform_2, window_bounds = array<i64: 8, 32>}, {pipeline_mode = #tpu.pipeline_mode<synchronous>, transform_indices = @transform_3, window_bounds = array<i64: 3, 32>}, {pipeline_mode = #tpu.pipeline_mode<synchronous>, transform_indices = @transform_4, window_bounds = array<i64: 3, 32>}, {transform_indices = @transform_5, window_bounds = array<i64: 8, 32>}, {transform_indices = @transform_6, window_bounds = array<i64: 8, 32>}, {transform_indices = @transform_7, window_bounds = array<i64: 8, 32>}]} {
    %c0 = arith.constant 0 : index
    %c0_0 = arith.constant 0 : index
    %0 = vector.load %arg4[%c0, %c0_0] : memref<3x32xf32, #tpu.memory_space<vmem>>, vector<3x32xf32>
    %c0_1 = arith.constant 0 : index
    %c0_2 = arith.constant 0 : index
    %1 = vector.load %arg5[%c0_1, %c0_2] : memref<3x32xf32, #tpu.memory_space<vmem>>, vector<3x32xf32>
    %c0_3 = arith.constant 0 : index
    %c0_4 = arith.constant 0 : index
    %2 = vector.load %arg1[%c0_3, %c0_4] : memref<8x32xf32, #tpu.memory_space<vmem>>, vector<8x32xf32>
    %cst = arith.constant dense<0.000000e+00> : vector<8xf32>
    %3 = vector.multi_reduction <add>, %2, %cst [1] : vector<8x32xf32> to vector<8xf32>
    %4 = vector.shape_cast %3 : vector<8xf32> to vector<8x1xf32>
    %cst_5 = arith.constant 3.200000e+01 : f32
    %5 = vector.broadcast %cst_5 : f32 to vector<8x1xf32>
    %6 = arith.divf %4, %5 : vector<8x1xf32>
    %7 = vector.broadcast %6 : vector<8x1xf32> to vector<8x32xf32>
    %8 = arith.subf %2, %7 : vector<8x32xf32>
    %9 = arith.mulf %8, %8 : vector<8x32xf32>
    %cst_6 = arith.constant dense<0.000000e+00> : vector<8xf32>
    %10 = vector.multi_reduction <add>, %9, %cst_6 [1] : vector<8x32xf32> to vector<8xf32>
    %11 = vector.shape_cast %10 : vector<8xf32> to vector<8x1xf32>
    %cst_7 = arith.constant 3.100000e+01 : f32
    %12 = vector.broadcast %cst_7 : f32 to vector<8x1xf32>
    %13 = arith.divf %11, %12 : vector<8x1xf32>
    %14 = math.sqrt %13 : vector<8x1xf32>
    %cst_8 = arith.constant 9.99999997E-7 : f32
    %15 = vector.broadcast %cst_8 : f32 to vector<8x1xf32>
    %16 = arith.addf %14, %15 : vector<8x1xf32>
    %17 = tpu.reciprocal %16 : vector<8x1xf32> -> vector<8x1xf32>
    %18 = vector.extract_strided_slice %0 {offsets = [0, 0], sizes = [1, 32], strides = [1, 1]} : vector<3x32xf32> to vector<1x32xf32>
    %19 = vector.extract_strided_slice %1 {offsets = [0, 0], sizes = [1, 32], strides = [1, 1]} : vector<3x32xf32> to vector<1x32xf32>
    %20 = vector.broadcast %17 : vector<8x1xf32> to vector<8x32xf32>
    %21 = arith.mulf %8, %20 : vector<8x32xf32>
    %22 = vector.broadcast %18 : vector<1x32xf32> to vector<8x32xf32>
    %23 = arith.mulf %21, %22 : vector<8x32xf32>
    %24 = vector.broadcast %19 : vector<1x32xf32> to vector<8x32xf32>
    %25 = arith.addf %23, %24 : vector<8x32xf32>
    %c0_9 = arith.constant 0 : index
    %c0_10 = arith.constant 0 : index
    %26 = vector.load %arg6[%c0_9, %c0_10] : memref<8x32xf32, #tpu.memory_space<vmem>>, vector<8x32xf32>
    tpu.vector_store %arg6[%c0_9, %c0_10], %25 {strides = array<i32>} : memref<8x32xf32, #tpu.memory_space<vmem>>, vector<8x32xf32>,
    %c0_11 = arith.constant 0 : index
    %c0_12 = arith.constant 0 : index
    %27 = vector.load %arg2[%c0_11, %c0_12] : memref<8x32xf32, #tpu.memory_space<vmem>>, vector<8x32xf32>
    %cst_13 = arith.constant dense<0.000000e+00> : vector<8xf32>
    %28 = vector.multi_reduction <add>, %27, %cst_13 [1] : vector<8x32xf32> to vector<8xf32>
    %29 = vector.shape_cast %28 : vector<8xf32> to vector<8x1xf32>
    %cst_14 = arith.constant 3.200000e+01 : f32
    %30 = vector.broadcast %cst_14 : f32 to vector<8x1xf32>
    %31 = arith.divf %29, %30 : vector<8x1xf32>
    %32 = vector.broadcast %31 : vector<8x1xf32> to vector<8x32xf32>
    %33 = arith.subf %27, %32 : vector<8x32xf32>
    %34 = arith.mulf %33, %33 : vector<8x32xf32>
    %cst_15 = arith.constant dense<0.000000e+00> : vector<8xf32>
    %35 = vector.multi_reduction <add>, %34, %cst_15 [1] : vector<8x32xf32> to vector<8xf32>
    %36 = vector.shape_cast %35 : vector<8xf32> to vector<8x1xf32>
    %cst_16 = arith.constant 3.100000e+01 : f32
    %37 = vector.broadcast %cst_16 : f32 to vector<8x1xf32>
    %38 = arith.divf %36, %37 : vector<8x1xf32>
    %39 = math.sqrt %38 : vector<8x1xf32>
    %cst_17 = arith.constant 9.99999997E-7 : f32
    %40 = vector.broadcast %cst_17 : f32 to vector<8x1xf32>
    %41 = arith.addf %39, %40 : vector<8x1xf32>
    %42 = tpu.reciprocal %41 : vector<8x1xf32> -> vector<8x1xf32>
    %43 = vector.extract_strided_slice %0 {offsets = [1, 0], sizes = [1, 32], strides = [1, 1]} : vector<3x32xf32> to vector<1x32xf32>
    %44 = vector.extract_strided_slice %1 {offsets = [1, 0], sizes = [1, 32], strides = [1, 1]} : vector<3x32xf32> to vector<1x32xf32>
    %45 = vector.broadcast %42 : vector<8x1xf32> to vector<8x32xf32>
    %46 = arith.mulf %33, %45 : vector<8x32xf32>
    %47 = vector.broadcast %43 : vector<1x32xf32> to vector<8x32xf32>
    %48 = arith.mulf %46, %47 : vector<8x32xf32>
    %49 = vector.broadcast %44 : vector<1x32xf32> to vector<8x32xf32>
    %50 = arith.addf %48, %49 : vector<8x32xf32>
    %c0_18 = arith.constant 0 : index
    %c0_19 = arith.constant 0 : index
    %51 = vector.load %arg7[%c0_18, %c0_19] : memref<8x32xf32, #tpu.memory_space<vmem>>, vector<8x32xf32>
    tpu.vector_store %arg7[%c0_18, %c0_19], %50 {strides = array<i32>} : memref<8x32xf32, #tpu.memory_space<vmem>>, vector<8x32xf32>,
    %c0_20 = arith.constant 0 : index
    %c0_21 = arith.constant 0 : index
    %52 = vector.load %arg3[%c0_20, %c0_21] : memref<8x32xf32, #tpu.memory_space<vmem>>, vector<8x32xf32>
    %cst_22 = arith.constant dense<0.000000e+00> : vector<8xf32>
    %53 = vector.multi_reduction <add>, %52, %cst_22 [1] : vector<8x32xf32> to vector<8xf32>
    %54 = vector.shape_cast %53 : vector<8xf32> to vector<8x1xf32>
    %cst_23 = arith.constant 3.200000e+01 : f32
    %55 = vector.broadcast %cst_23 : f32 to vector<8x1xf32>
    %56 = arith.divf %54, %55 : vector<8x1xf32>
    %57 = vector.broadcast %56 : vector<8x1xf32> to vector<8x32xf32>
    %58 = arith.subf %52, %57 : vector<8x32xf32>
    %59 = arith.mulf %58, %58 : vector<8x32xf32>
    %cst_24 = arith.constant dense<0.000000e+00> : vector<8xf32>
    %60 = vector.multi_reduction <add>, %59, %cst_24 [1] : vector<8x32xf32> to vector<8xf32>
    %61 = vector.shape_cast %60 : vector<8xf32> to vector<8x1xf32>
    %cst_25 = arith.constant 3.100000e+01 : f32
    %62 = vector.broadcast %cst_25 : f32 to vector<8x1xf32>
    %63 = arith.divf %61, %62 : vector<8x1xf32>
    %64 = math.sqrt %63 : vector<8x1xf32>
    %cst_26 = arith.constant 9.99999997E-7 : f32
    %65 = vector.broadcast %cst_26 : f32 to vector<8x1xf32>
    %66 = arith.addf %64, %65 : vector<8x1xf32>
    %67 = tpu.reciprocal %66 : vector<8x1xf32> -> vector<8x1xf32>
    %68 = vector.extract_strided_slice %0 {offsets = [2, 0], sizes = [1, 32], strides = [1, 1]} : vector<3x32xf32> to vector<1x32xf32>
    %69 = vector.extract_strided_slice %1 {offsets = [2, 0], sizes = [1, 32], strides = [1, 1]} : vector<3x32xf32> to vector<1x32xf32>
    %70 = vector.broadcast %67 : vector<8x1xf32> to vector<8x32xf32>
    %71 = arith.mulf %58, %70 : vector<8x32xf32>
    %72 = vector.broadcast %68 : vector<1x32xf32> to vector<8x32xf32>
    %73 = arith.mulf %71, %72 : vector<8x32xf32>
    %74 = vector.broadcast %69 : vector<1x32xf32> to vector<8x32xf32>
    %75 = arith.addf %73, %74 : vector<8x32xf32>
    %c0_27 = arith.constant 0 : index
    %c0_28 = arith.constant 0 : index
    %76 = vector.load %arg8[%c0_27, %c0_28] : memref<8x32xf32, #tpu.memory_space<vmem>>, vector<8x32xf32>
    tpu.vector_store %arg8[%c0_27, %c0_28], %75 {strides = array<i32>} : memref<8x32xf32, #tpu.memory_space<vmem>>, vector<8x32xf32>,
    return
  }
  func.func @transform_0(%arg0: i32) -> (i32, i32) {
    %c0_i32 = arith.constant 0 : i32
    %c0_i32_0 = arith.constant 0 : i32
    return %arg0, %c0_i32 : i32, i32
  }
  func.func @transform_1(%arg0: i32) -> (i32, i32) {
    %c0_i32 = arith.constant 0 : i32
    %c0_i32_0 = arith.constant 0 : i32
    return %arg0, %c0_i32 : i32, i32
  }
  func.func @transform_2(%arg0: i32) -> (i32, i32) {
    %c0_i32 = arith.constant 0 : i32
    %c0_i32_0 = arith.constant 0 : i32
    return %arg0, %c0_i32 : i32, i32
  }
  func.func @transform_3(%arg0: i32) -> (i32, i32) {
    %c0_i32 = arith.constant 0 : i32
    %c0_i32_0 = arith.constant 0 : i32
    %c0_i32_1 = arith.constant 0 : i32
    return %c0_i32, %c0_i32_0 : i32, i32
  }
  func.func @transform_4(%arg0: i32) -> (i32, i32) {
    %c0_i32 = arith.constant 0 : i32
    %c0_i32_0 = arith.constant 0 : i32
    %c0_i32_1 = arith.constant 0 : i32
    return %c0_i32, %c0_i32_0 : i32, i32
  }
  func.func @transform_5(%arg0: i32) -> (i32, i32) {
    %c0_i32 = arith.constant 0 : i32
    %c0_i32_0 = arith.constant 0 : i32
    return %arg0, %c0_i32 : i32, i32
  }
  func.func @transform_6(%arg0: i32) -> (i32, i32) {
    %c0_i32 = arith.constant 0 : i32
    %c0_i32_0 = arith.constant 0 : i32
    return %arg0, %c0_i32 : i32, i32
  }
  func.func @transform_7(%arg0: i32) -> (i32, i32) {
    %c0_i32 = arith.constant 0 : i32
    %c0_i32_0 = arith.constant 0 : i32
    return %arg0, %c0_i32 : i32, i32
  }
}

</mosaic_0001>

<llo_original>
// kernel: tpu_custom_call.1
$region0: #{tpu_custom_call.1}
  #allocation0 [shape = 'u32[]', space=smem, size = 0x4, offset = 0x4, fixed_abs, tag = 'smem constant byte address 0x4 - core index']
  #allocation1 [shape = 'u32[144,128]{1,0:T(1,128)}', space=vmem, size = 0x12000, scoped, tag = 'internal scratch']
  %s0 = inlined_call_operand.hbm [shape: f32[8,32], index: 0, kind: input, shape index: {}]
  %s1 = inlined_call_operand.hbm [shape: f32[8,32], index: 1, kind: input, shape index: {}]
  %s2 = inlined_call_operand.hbm [shape: f32[8,32], index: 2, kind: input, shape index: {}]
  %s3 = inlined_call_operand.vmem [shape: f32[3,32], index: 3, kind: input, shape index: {}]
  %s4 = inlined_call_operand.hbm [shape: f32[3,32], index: 4, kind: input, shape index: {}]
  %s5 = inlined_call_operand.hbm [shape: f32[8,32], index: 5, kind: output, shape index: {0}]
  %s6 = inlined_call_operand.hbm [shape: f32[8,32], index: 6, kind: output, shape index: {1}]
  %s7 = inlined_call_operand.hbm [shape: f32[8,32], index: 7, kind: output, shape index: {2}]
  %8 = xla_tuple %s5, %s6, %s7
  %s9 = sld [smem:[#allocation0]]
  $region62: #{tpu_custom_call.1} parent=0
    _
  %s11 = ssub.s32 1, %s9
  %s12 = scalar_select 0, %s11, %s9
  $region1: #{tpu_custom_call.1} parent=0
    #allocation2 [shape = 'u8[4096]{0}', space=vmem, size = 0x1000, scoped, tag = 'input window, operand 0, single buffered']
    #allocation3 [shape = 's32[1]{0}', space=sflag, size = 0x4, scoped, tag = 'scoped memory for tpu_custom_call.1']
    #allocation4 [shape = 's32[1]{0}', space=sflag, size = 0x4, scoped, tag = 'scoped memory for tpu_custom_call.1']
    #allocation5 [shape = 'u8[4096]{0}', space=vmem, size = 0x1000, scoped, tag = 'input window, operand 1, single buffered']
    #allocation6 [shape = 's32[1]{0}', space=sflag, size = 0x4, scoped, tag = 'scoped memory for tpu_custom_call.1']
    #allocation7 [shape = 'u8[4096]{0}', space=vmem, size = 0x1000, scoped, tag = 'input window, operand 2, single buffered']
    #allocation8 [shape = 'u8[2048]{0}', space=vmem, size = 0x800, scoped, tag = 'input window, operand 4, single buffered']
    #allocation9 [shape = 's32[1]{0}', space=sflag, size = 0x4, scoped, tag = 'scoped memory for tpu_custom_call.1']
    #allocation10 [shape = 'u8[4096]{0}', space=vmem, size = 0x1000, scoped, tag = 'output window, operand 0, single buffered']
    #allocation11 [shape = 'u8[4096]{0}', space=vmem, size = 0x1000, scoped, tag = 'output window, operand 1, single buffered']
    #allocation12 [shape = 's32[1]{0}', space=sflag, size = 0x4, scoped, tag = 'scoped memory for tpu_custom_call.1']
    #allocation13 [shape = 'u8[4096]{0}', space=vmem, size = 0x1000, scoped, tag = 'output window, operand 2, single buffered']
    %13 = vsyncpa [#allocation3], 0
    %14 = vsyncpa [#allocation6], 0
    %15 = vsyncpa [#allocation9], 0
    %16 = vsyncpa [#allocation4], 0
    %17 = vsyncpa [#allocation12], 0
    // Predicated region
    $region2: #{tpu_custom_call.1} parent=1 // pred_check
      _
    $region3: #{tpu_custom_call.1} parent=1 // pred_check_branch
      %19 = sbr.rel (0) target = $region5
    $region4: #{tpu_custom_call.1} parent=1 // pred_region
      %s21 = ssub.s32 128, 128
      %22 = vsyncadd [#allocation3], %s21
      %s24 = sshll.u32 [#allocation2], 4
      %s25 = int_to_ptr.vmem [resolvable:$true] %s24
      %27 = dma.hbm_to_vmem [thread:$0]  %s0, 128, %s25, [#allocation3]
    $region5: #{tpu_custom_call.1} parent=1 // pred_fallthru
      _
    // Predicated region
    $region6: #{tpu_custom_call.1} parent=1 // pred_check
      _
    $region7: #{tpu_custom_call.1} parent=1 // pred_check_branch
      %29 = sbr.rel (0) target = $region9
    $region8: #{tpu_custom_call.1} parent=1 // pred_region
      %s31 = ssub.s32 128, 128
      %32 = vsyncadd [#allocation6], %s31
      %s34 = sshll.u32 [#allocation5], 4
      %s35 = int_to_ptr.vmem [resolvable:$true] %s34
      %37 = dma.hbm_to_vmem [thread:$0]  %s1, 128, %s35, [#allocation6]
    $region9: #{tpu_custom_call.1} parent=1 // pred_fallthru
      _
    // Predicated region
    $region10: #{tpu_custom_call.1} parent=1 // pred_check
      _
    $region11: #{tpu_custom_call.1} parent=1 // pred_check_branch
      %39 = sbr.rel (0) target = $region13
    $region12: #{tpu_custom_call.1} parent=1 // pred_region
      %s41 = ssub.s32 128, 128
      %42 = vsyncadd [#allocation6], %s41
      %s44 = sshll.u32 [#allocation7], 4
      %s45 = int_to_ptr.vmem [resolvable:$true] %s44
      %47 = dma.hbm_to_vmem [thread:$0]  %s2, 128, %s45, [#allocation6]
    $region13: #{tpu_custom_call.1} parent=1 // pred_fallthru
      _
    // Predicated region
    $region14: #{tpu_custom_call.1} parent=1 // pred_check
      _
    $region15: #{tpu_custom_call.1} parent=1 // pred_check_branch
      %49 = sbr.rel (0) target = $region17
    $region16: #{tpu_custom_call.1} parent=1 // pred_region
      _
    $region17: #{tpu_custom_call.1} parent=1 // pred_fallthru
      _
    // Predicated region
    $region18: #{tpu_custom_call.1} parent=1 // pred_check
      _
    $region19: #{tpu_custom_call.1} parent=1 // pred_check_branch
      %51 = sbr.rel (0) target = $region21
    $region20: #{tpu_custom_call.1} parent=1 // pred_region
      %s53 = ssub.s32 64, 64
      %54 = vsyncadd [#allocation9], %s53
      %s56 = sshll.u32 [#allocation8], 4
      %s57 = int_to_ptr.vmem [resolvable:$true] %s56
      %59 = dma.hbm_to_vmem [thread:$0]  %s4, 64, %s57, [#allocation9]
    $region21: #{tpu_custom_call.1} parent=1 // pred_fallthru
      _
    // Predicated region
    $region22: #{tpu_custom_call.1} parent=1 // pred_check
      _
    $region23: #{tpu_custom_call.1} parent=1 // pred_check_branch
      %61 = sbr.rel (0) target = $region25
    $region24: #{tpu_custom_call.1} parent=1 // pred_region
      %62 = dma.done [#allocation3], 128
    $region25: #{tpu_custom_call.1} parent=1 // pred_fallthru
      _
    // Predicated region
    $region26: #{tpu_custom_call.1} parent=1 // pred_check
      _
    $region27: #{tpu_custom_call.1} parent=1 // pred_check_branch
      %64 = sbr.rel (0) target = $region29
    $region28: #{tpu_custom_call.1} parent=1 // pred_region
      %65 = dma.done [#allocation6], 128
    $region29: #{tpu_custom_call.1} parent=1 // pred_fallthru
      _
    // Predicated region
    $region30: #{tpu_custom_call.1} parent=1 // pred_check
      _
    $region31: #{tpu_custom_call.1} parent=1 // pred_check_branch
      %67 = sbr.rel (0) target = $region33
    $region32: #{tpu_custom_call.1} parent=1 // pred_region
      %68 = dma.done [#allocation6], 128
    $region33: #{tpu_custom_call.1} parent=1 // pred_fallthru
      _
    // Predicated region
    $region34: #{tpu_custom_call.1} parent=1 // pred_check
      _
    $region35: #{tpu_custom_call.1} parent=1 // pred_check_branch
      %70 = sbr.rel (0) target = $region37
    $region36: #{tpu_custom_call.1} parent=1 // pred_region
      %71 = dma.done [#allocation9], 64
    $region37: #{tpu_custom_call.1} parent=1 // pred_fallthru
      _
    %v72 = vld [vmem:[%s3] sm:$0x7]
    %v73 = vld [vmem:[#allocation8] sm:$0x7]
    %v74 = vld [vmem:[#allocation2] sm:$0xff]
    %vm75 = vcmask 261120
    %v76 = vsel %vm75, %v74, 0.0
    %77 = vadd.xlane.f32.xlu0 %v76
    %v78 = vpop.xlane.xlu0 %77
    %v79 = vrcp.pop 32.0
    %v80 = vmul.f32 %v78, %v79
    %v81 = vsub.f32 %v74, %v80
    %v82 = vmul.f32 %v81, %v81
    %v83 = vsel %vm75, %v82, 0.0
    %84 = vadd.xlane.f32.xlu0 %v83
    %v85 = vpop.xlane.xlu0 %84
    %v86 = vrcp.pop 31.0
    %v87 = vmul.f32 %v85, %v86
    %v88 = vrsqrt.pop %v87
    %v89 = vmul.f32 %v87, %v88
    %vm90 = vcmp.eq.f32.partialorder %v87, inf
    %v91 = vsel %vm90, %v87, %v89
    %vm92 = vcmp.eq.f32.partialorder %v87, 0.0
    %v93 = vand.u32 %v87, 2147483648
    %v94 = vsel %vm92, %v93, %v91
    %v95 = vadd.f32 %v94, 1e-06
    %v96 = vrcp.pop %v95
    %v97 = vmul.f32 %v81, %v96
    %v98 = vlaneseq
    %v99 = vshrl.u32 %v98, 7
    %v100 = vsub.s32 0, %v99
    %v101 = vrot.slane %v72, %v100
    %v102 = vmul.f32 %v97, %v101
    %v103 = vlaneseq
    %v104 = vshrl.u32 %v103, 7
    %v105 = vsub.s32 0, %v104
    %v106 = vrot.slane %v73, %v105
    %v107 = vadd.f32 %v102, %v106
    %108 = vst.msk [vmem:[#allocation10] sm:$0xff] %vm75, %v107
    %v109 = vld [vmem:[#allocation5] sm:$0xff]
    %v110 = vsel %vm75, %v109, 0.0
    %111 = vadd.xlane.f32.xlu0 %v110
    %v112 = vpop.xlane.xlu0 %111
    %v113 = vmul.f32 %v112, %v79
    %v114 = vsub.f32 %v109, %v113
    %v115 = vmul.f32 %v114, %v114
    %v116 = vsel %vm75, %v115, 0.0
    %117 = vadd.xlane.f32.xlu0 %v116
    %v118 = vpop.xlane.xlu0 %117
    %v119 = vmul.f32 %v118, %v86
    %v120 = vrsqrt.pop %v119
    %v121 = vmul.f32 %v119, %v120
    %vm122 = vcmp.eq.f32.partialorder %v119, inf
    %v123 = vsel %vm122, %v119, %v121
    %vm124 = vcmp.eq.f32.partialorder %v119, 0.0
    %v125 = vand.u32 %v119, 2147483648
    %v126 = vsel %vm124, %v125, %v123
    %v127 = vadd.f32 %v126, 1e-06
    %v128 = vrcp.pop %v127
    %v129 = vmul.f32 %v114, %v128
    %v130 = vlaneseq
    %v131 = vshrl.u32 %v130, 7
    %v132 = vsub.s32 1, %v131
    %v133 = vrot.slane %v72, %v132
    %v134 = vmul.f32 %v129, %v133
    %v135 = vlaneseq
    %v136 = vshrl.u32 %v135, 7
    %v137 = vsub.s32 1, %v136
    %v138 = vrot.slane %v73, %v137
    %v139 = vadd.f32 %v134, %v138
    %140 = vst.msk [vmem:[#allocation11] sm:$0xff] %vm75, %v139
    %v141 = vld [vmem:[#allocation7] sm:$0xff]
    %v142 = vsel %vm75, %v141, 0.0
    %143 = vadd.xlane.f32.xlu0 %v142
    %v144 = vpop.xlane.xlu0 %143
    %v145 = vmul.f32 %v144, %v79
    %v146 = vsub.f32 %v141, %v145
    %v147 = vmul.f32 %v146, %v146
    %v148 = vsel %vm75, %v147, 0.0
    %149 = vadd.xlane.f32.xlu0 %v148
    %v150 = vpop.xlane.xlu0 %149
    %v151 = vmul.f32 %v150, %v86
    %v152 = vrsqrt.pop %v151
    %v153 = vmul.f32 %v151, %v152
    %vm154 = vcmp.eq.f32.partialorder %v151, inf
    %v155 = vsel %vm154, %v151, %v153
    %vm156 = vcmp.eq.f32.partialorder %v151, 0.0
    %v157 = vand.u32 %v151, 2147483648
    %v158 = vsel %vm156, %v157, %v155
    %v159 = vadd.f32 %v158, 1e-06
    %v160 = vrcp.pop %v159
    %v161 = vmul.f32 %v146, %v160
    %v162 = vlaneseq
    %v163 = vshrl.u32 %v162, 7
    %v164 = vsub.s32 2, %v163
    %v165 = vrot.slane %v72, %v164
    %v166 = vmul.f32 %v161, %v165
    %v167 = vlaneseq
    %v168 = vshrl.u32 %v167, 7
    %v169 = vsub.s32 2, %v168
    %v170 = vrot.slane %v73, %v169
    %v171 = vadd.f32 %v166, %v170
    %172 = vst.msk [vmem:[#allocation13] sm:$0xff] %vm75, %v171
    // Predicated region
    $region38: #{tpu_custom_call.1} parent=1 // pred_check
      _
    $region39: #{tpu_custom_call.1} parent=1 // pred_check_branch
      %174 = sbr.rel (0) target = $region41
    $region40: #{tpu_custom_call.1} parent=1 // pred_region
      %s176 = ssub.s32 128, 128
      %177 = vsyncadd [#allocation4], %s176
      %s179 = sshll.u32 [#allocation10], 4
      %s180 = int_to_ptr.vmem [resolvable:$true] %s179
      %182 = dma.vmem_to_hbm [thread:$0]  %s180, 128, %s5, [#allocation4]
    $region41: #{tpu_custom_call.1} parent=1 // pred_fallthru
      _
    // Predicated region
    $region42: #{tpu_custom_call.1} parent=1 // pred_check
      _
    $region43: #{tpu_custom_call.1} parent=1 // pred_check_branch
      %184 = sbr.rel (0) target = $region45
    $region44: #{tpu_custom_call.1} parent=1 // pred_region
      %s186 = ssub.s32 128, 128
      %187 = vsyncadd [#allocation12], %s186
      %s189 = sshll.u32 [#allocation11], 4
      %s190 = int_to_ptr.vmem [resolvable:$true] %s189
      %192 = dma.vmem_to_hbm [thread:$0]  %s190, 128, %s6, [#allocation12]
    $region45: #{tpu_custom_call.1} parent=1 // pred_fallthru
      _
    // Predicated region
    $region46: #{tpu_custom_call.1} parent=1 // pred_check
      _
    $region47: #{tpu_custom_call.1} parent=1 // pred_check_branch
      %194 = sbr.rel (0) target = $region49
    $region48: #{tpu_custom_call.1} parent=1 // pred_region
      %s196 = ssub.s32 128, 128
      %197 = vsyncadd [#allocation12], %s196
      %s199 = sshll.u32 [#allocation13], 4
      %s200 = int_to_ptr.vmem [resolvable:$true] %s199
      %202 = dma.vmem_to_hbm [thread:$0]  %s200, 128, %s7, [#allocation12]
    $region49: #{tpu_custom_call.1} parent=1 // pred_fallthru
      _
    // Predicated region
    $region50: #{tpu_custom_call.1} parent=1 // pred_check
      _
    $region51: #{tpu_custom_call.1} parent=1 // pred_check_branch
      %204 = sbr.rel (0) target = $region53
    $region52: #{tpu_custom_call.1} parent=1 // pred_region
      %205 = dma.done [#allocation4], 128
    $region53: #{tpu_custom_call.1} parent=1 // pred_fallthru
      _
    // Predicated region
    $region54: #{tpu_custom_call.1} parent=1 // pred_check
      _
    $region55: #{tpu_custom_call.1} parent=1 // pred_check_branch
      %207 = sbr.rel (0) target = $region57
    $region56: #{tpu_custom_call.1} parent=1 // pred_region
      %208 = dma.done [#allocation12], 128
    $region57: #{tpu_custom_call.1} parent=1 // pred_fallthru
      _
    // Predicated region
    $region58: #{tpu_custom_call.1} parent=1 // pred_check
      _
    $region59: #{tpu_custom_call.1} parent=1 // pred_check_branch
      %210 = sbr.rel (0) target = $region61
    $region60: #{tpu_custom_call.1} parent=1 // pred_region
      %211 = dma.done [#allocation12], 128
    $region61: #{tpu_custom_call.1} parent=1 // pred_fallthru
      _
    %212 = vsyncpa [#allocation3], 1
    %213 = vsyncpa [#allocation6], 1
    %214 = vsyncpa [#allocation9], 1
    %215 = vsyncpa [#allocation4], 1
    %216 = vsyncpa [#allocation12], 1

</llo_original>
